<compile_context>
chip_gen: v6e
topology: v6e:2x2x1
jax: 0.10.0
libtpu: 0.0.40
codegen_flags: <defaults>
</compile_context>

<pallas_src>
import jax
import jax.numpy as jnp
from jax.experimental import pallas as pl
from jax.experimental.pallas import tpu as pltpu

# ---- model hyperparameters (match the PyTorch module defaults) -------------
LATENT_SPACE_SIZE = 128                       # hidden size H of encoder output
CONTENT_PORTION = 100                         # last 100 dims = content
HARDNESS_DIM = LATENT_SPACE_SIZE - CONTENT_PORTION   # 28 = hardness dims
REG_HIDDEN = 512                              # Linear(28->512) -> ReLU -> Linear(512->1) -> Sigmoid
W1_ROWS = 32                                  # sublane-aligned zero-pad of the 28-row weight

B = 2   # batch
S = 8   # sequence length
H = LATENT_SPACE_SIZE


def _predictor_kernel(aux_ref, h_ref, w1_ref, head2_ref, out_ref):
    """aux_ref:   (3B+1,) SMEM  [sim_label(B), init_score(B), targ_score(B), b2]
       h_ref:     (2B, S, H)    stacked [initial; target] last_hidden_state
       w1_ref:    (W1_ROWS, 512) layer1 weight, rows >= HARDNESS_DIM are zero
       head2_ref: (2, 512)       row 0 = b1, row 1 = w2^T
       out_ref:   (OUT_ROWS, H)  lane 0 = pred (rows < B), lane 1 = total loss
    """
    f32 = jnp.float32
    b2_sz, _, h_sz = h_ref.shape
    b_sz = b2_sz // 2
    out_rows = out_ref.shape[0]

    # ---- encoder pooling: ONE sublane reduction over the sequence axis ----
    lat = jnp.sum(h_ref[...], axis=1)                 # (2B, H)
    lat_i = lat[:b_sz]                                # (B, H)
    lat_t = lat[b_sz:]                                # (B, H)

    # ---- content / hardness split via lane mask (no unaligned lane slices) --
    lane = jax.lax.broadcasted_iota(jnp.int32, (b_sz, h_sz), 1)
    cmask = (lane >= HARDNESS_DIM).astype(f32)        # content = last 100 lanes
    ci = lat_i * cmask
    ct = lat_t * cmask

    # ---- CosineEmbeddingLoss (margin=0, mean reduction) ----
    # Fuse the three cross-lane reductions into one pass over a (3B, H) stack.
    prods = jnp.concatenate([ci * ct, ci * ci, ct * ct], axis=0)   # (3B, H)
    sums = jnp.sum(prods, axis=1, keepdims=True)                   # (3B, 1)
    dot = sums[:b_sz]
    ni2 = sums[b_sz:2 * b_sz]
    nt2 = sums[2 * b_sz:]
    # dot / max(||ci||*||ct||, 1e-8) == dot * rsqrt(max(ni2*nt2, 1e-16))
    cos = dot * jax.lax.rsqrt(jnp.maximum(ni2 * nt2, 1e-16))       # (B, 1)

    # ---- per-sample scalars from SMEM (cheap sld, no VMEM DMA) ----
    row = jax.lax.broadcasted_iota(jnp.int32, (b_sz, 1), 0)
    y_vec = jnp.zeros((b_sz, 1), f32)        # similarity label in {+1,-1}
    lbl_vec = jnp.zeros((b_sz, 1), f32)      # heaviside(init_score - targ_score, 1)
    for b in range(b_sz):                    # unrolled at trace time (B is tiny)
        y_b = aux_ref[b]
        d_b = aux_ref[b_sz + b] - aux_ref[2 * b_sz + b]
        lbl_b = jnp.where(d_b < 0.0, 0.0, 1.0)
        y_vec = jnp.where(row == b, y_b, y_vec)
        lbl_vec = jnp.where(row == b, lbl_b, lbl_vec)
    b2 = aux_ref[3 * b_sz]                   # regression output bias (scalar)

    per_sample = jnp.where(y_vec > 0, 1.0 - cos, jnp.maximum(cos, 0.0))
    content_loss = jnp.mean(per_sample)

    # ---- regression head on the hardness difference ----
    # w1 rows >= HARDNESS_DIM are zero, so sub[:, :W1_ROWS] @ w1_pad contracts
    # to exactly sub[:, :28] @ w1_orig on the MXU (K padded internally).
    sub = lat_i - lat_t                                    # (B, H)
    sub_h = sub[:, :W1_ROWS]                               # (B, 32)
    head2 = head2_ref[...]                                 # (2, 512)
    b1 = head2[0:1, :]                                     # (1, 512)
    w2t = head2[1:2, :]                                    # (1, 512)

    h1 = jnp.dot(sub_h, w1_ref[...], preferred_element_type=f32) + b1
    h1 = jnp.maximum(h1, 0.0)                              # ReLU, (B, 512)
    # N=1 output: VPU multiply + lane reduction instead of an MXU pass.
    logits = jnp.sum(h1 * w2t, axis=1, keepdims=True) + b2  # (B, 1)
    pred = jax.nn.sigmoid(logits)                           # (B, 1)

    # ---- BCE against heaviside labels, computed from logits ----
    # BCE(sigmoid(z), y) = softplus(z) - y*z  (matches BCELoss within its -100 clamp)
    softplus_z = jnp.maximum(logits, 0.0) + jnp.log1p(jnp.exp(-jnp.abs(logits)))
    bce = softplus_z - lbl_vec * logits
    classification_loss = jnp.mean(bce)

    total_loss = content_loss + classification_loss

    # ---- single lane-dense, full-sublane output: lane 0 = pred, lane 1 = loss ----
    if out_rows > b_sz:
        pred_pad = jnp.concatenate(
            [pred, jnp.zeros((out_rows - b_sz, 1), f32)], axis=0)   # (OUT_ROWS, 1)
    else:
        pred_pad = pred
    lane_o = jax.lax.broadcasted_iota(jnp.int32, (out_rows, h_sz), 1)
    out_ref[...] = jnp.where(lane_o == 0, pred_pad,
                             jnp.where(lane_o == 1, total_loss, 0.0))


def pack_params(params):
    """Constant parameter re-layout — done ONCE at init, not per forward call."""
    w1, b1, w2, b2 = params
    w1_pad = jnp.zeros((W1_ROWS, REG_HIDDEN), jnp.float32).at[:HARDNESS_DIM, :].set(
        w1.astype(jnp.float32))                                        # (32, 512)
    head2 = jnp.concatenate(
        [b1.astype(jnp.float32).reshape(1, REG_HIDDEN),
         w2.astype(jnp.float32).reshape(REG_HIDDEN, 1).T], axis=0)      # (2, 512)
    b2_scalar = jnp.reshape(b2, ()).astype(jnp.float32)
    return w1_pad, head2, b2_scalar


@jax.jit
def transformer_predictor_forward(init_hidden, targ_hidden, initial_score,
                                  target_score, similarity_label, packed_params):
    """Pallas implementation of TransformerPredictor.forward (post-encoder).

    init_hidden, targ_hidden: (B, S, H) encoder last_hidden_state stand-ins.
    initial_score, target_score, similarity_label: (B,)
    packed_params: output of pack_params().
    Returns (total_loss scalar, predicted_difference_score (B, 1)).
    """
    w1_pad, head2, b2_scalar = packed_params
    b_, s_, h_ = init_hidden.shape
    out_rows = max(8, b_)   # fill sublanes so the output store is unmasked

    # Layout plumbing only (fused by XLA under jit).
    hidden = jnp.concatenate([init_hidden, targ_hidden], axis=0).astype(jnp.float32)  # (2B,S,H)
    aux = jnp.concatenate([similarity_label.astype(jnp.float32).reshape(-1),
                           initial_score.astype(jnp.float32).reshape(-1),
                           target_score.astype(jnp.float32).reshape(-1),
                           b2_scalar.reshape(1)], axis=0)                              # (3B+1,)

    smem = pl.BlockSpec(memory_space=pltpu.MemorySpace.SMEM)
    vmem = pl.BlockSpec(memory_space=pltpu.MemorySpace.VMEM)
    out = pl.pallas_call(
        _predictor_kernel,
        out_shape=jax.ShapeDtypeStruct((out_rows, h_), jnp.float32),
        in_specs=[smem, vmem, vmem, vmem],
        out_specs=vmem,
    )(aux, hidden, w1_pad, head2)

    pred = out[:b_, 0:1]
    total_loss = out[0, 1]
    return total_loss, pred


def _reference_forward(init_hidden, targ_hidden, initial_score, target_score,
                       similarity_label, params):
    """Pure-JAX reference mirroring the original PyTorch math."""
    w1, b1, w2, b2 = params
    lat_i = jnp.sum(init_hidden, axis=1)
    lat_t = jnp.sum(targ_hidden, axis=1)
    ci, ct = lat_i[:, -CONTENT_PORTION:], lat_t[:, -CONTENT_PORTION:]
    hi, ht = lat_i[:, :HARDNESS_DIM], lat_t[:, :HARDNESS_DIM]
    cos = jnp.sum(ci * ct, axis=1) / jnp.maximum(
        jnp.linalg.norm(ci, axis=1) * jnp.linalg.norm(ct, axis=1), 1e-8)
    content_loss = jnp.mean(
        jnp.where(similarity_label > 0, 1.0 - cos, jnp.maximum(cos, 0.0)))
    h1 = jnp.maximum((hi - ht) @ w1 + b1, 0.0)
    pred = jax.nn.sigmoid(h1 @ w2 + b2)
    diff = (initial_score - target_score).reshape(-1, 1)
    labels = jnp.where(diff < 0.0, 0.0, 1.0)
    bce = jnp.mean(-(labels * jnp.maximum(jnp.log(pred), -100.0)
                     + (1.0 - labels) * jnp.maximum(jnp.log(1.0 - pred), -100.0)))
    return content_loss + bce, pred


def init_params(key):
    """Deterministic Linear init (PyTorch-style uniform(-1/sqrt(fan_in), ...))."""
    k1, k2, k3, k4 = jax.random.split(key, 4)
    bound1 = 1.0 / jnp.sqrt(HARDNESS_DIM)
    bound2 = 1.0 / jnp.sqrt(REG_HIDDEN)
    w1 = jax.random.uniform(k1, (HARDNESS_DIM, REG_HIDDEN), jnp.float32, -bound1, bound1)
    b1 = jax.random.uniform(k2, (1, REG_HIDDEN), jnp.float32, -bound1, bound1)
    w2 = jax.random.uniform(k3, (REG_HIDDEN, 1), jnp.float32, -bound2, bound2)
    b2 = jax.random.uniform(k4, (1, 1), jnp.float32, -bound2, bound2)
    return w1, b1, w2, b2


if __name__ == "__main__":
    key = jax.random.PRNGKey(0)
    kp, k1, k2, k3, k4 = jax.random.split(key, 5)

    params = init_params(kp)
    packed_params = pack_params(params)   # constant re-layout hoisted out of forward

    init_hidden = jax.random.normal(k1, (B, S, H), jnp.float32)
    targ_hidden = jax.random.normal(k2, (B, S, H), jnp.float32)
    initial_score = jax.random.normal(k3, (B,), jnp.float32)
    target_score = jax.random.normal(k4, (B,), jnp.float32)
    similarity_label = jnp.array([1.0, -1.0], jnp.float32)

    total_loss, pred = transformer_predictor_forward(
        init_hidden, targ_hidden, initial_score, target_score,
        similarity_label, packed_params)
    jax.block_until_ready((total_loss, pred))

    ref_loss, ref_pred = _reference_forward(
        init_hidden, targ_hidden, initial_score, target_score,
        similarity_label, params)
    assert jnp.allclose(total_loss, ref_loss, rtol=5e-4, atol=5e-4), (total_loss, ref_loss)
    assert jnp.allclose(pred, ref_pred, rtol=5e-4, atol=5e-4), (pred, ref_pred)

    print("KERNEL_OK")
</pallas_src>

<mosaic_0001>
module attributes {stable_mosaic.version = 11 : i64} {
  func.func @_predictor_kernel(%arg0: memref<7xf32, #tpu.memory_space<smem>>, %arg1: memref<4x8x128xf32, #tpu.memory_space<vmem>>, %arg2: memref<32x512xf32, #tpu.memory_space<vmem>>, %arg3: memref<2x512xf32, #tpu.memory_space<vmem>>, %arg4: memref<8x128xf32, #tpu.memory_space<vmem>>) attributes {dimension_semantics = [], scalar_prefetch = 0 : i64, scratch_operands = 0 : i64, tpu.core_type = #tpu.core_type<tc>} {
    %c0 = arith.constant 0 : index
    %c0_0 = arith.constant 0 : index
    %c0_1 = arith.constant 0 : index
    %0 = vector.load %arg1[%c0, %c0_0, %c0_1] : memref<4x8x128xf32, #tpu.memory_space<vmem>>, vector<4x8x128xf32>
    %cst = arith.constant dense<0.000000e+00> : vector<4x128xf32>
    %1 = vector.multi_reduction <add>, %0, %cst [1] : vector<4x8x128xf32> to vector<4x128xf32>
    %2 = vector.extract_strided_slice %1 {offsets = [0, 0], sizes = [2, 128], strides = [1, 1]} : vector<4x128xf32> to vector<2x128xf32>
    %3 = vector.extract_strided_slice %1 {offsets = [2, 0], sizes = [2, 128], strides = [1, 1]} : vector<4x128xf32> to vector<2x128xf32>
    %4 = tpu.iota {dimensions = array<i32: 1>} : vector<2x128xi32>
    %c28_i32 = arith.constant 28 : i32
    %5 = vector.broadcast %c28_i32 : i32 to vector<2x128xi32>
    %6 = arith.cmpi sge, %4, %5 : vector<2x128xi32>
    %7 = arith.extui %6 : vector<2x128xi1> to vector<2x128xi32>
    %8 = arith.sitofp %7 : vector<2x128xi32> to vector<2x128xf32>
    %9 = arith.mulf %2, %8 : vector<2x128xf32>
    %10 = arith.mulf %3, %8 : vector<2x128xf32>
    %11 = arith.mulf %9, %10 : vector<2x128xf32>
    %12 = arith.mulf %9, %9 : vector<2x128xf32>
    %13 = arith.mulf %10, %10 : vector<2x128xf32>
    %14 = tpu.concatenate %11, %12, %13 in 0 : vector<2x128xf32>, vector<2x128xf32>, vector<2x128xf32> -> vector<6x128xf32>
    %cst_2 = arith.constant dense<0.000000e+00> : vector<6xf32>
    %15 = vector.multi_reduction <add>, %14, %cst_2 [1] : vector<6x128xf32> to vector<6xf32>
    %16 = vector.shape_cast %15 : vector<6xf32> to vector<6x1xf32>
    %17 = vector.extract_strided_slice %16 {offsets = [0, 0], sizes = [2, 1], strides = [1, 1]} : vector<6x1xf32> to vector<2x1xf32>
    %18 = vector.extract_strided_slice %16 {offsets = [2, 0], sizes = [2, 1], strides = [1, 1]} : vector<6x1xf32> to vector<2x1xf32>
    %19 = vector.extract_strided_slice %16 {offsets = [4, 0], sizes = [2, 1], strides = [1, 1]} : vector<6x1xf32> to vector<2x1xf32>
    %20 = arith.mulf %18, %19 : vector<2x1xf32>
    %cst_3 = arith.constant 1.000000e-16 : f32
    %21 = vector.broadcast %cst_3 : f32 to vector<2x1xf32>
    %22 = arith.maximumf %20, %21 : vector<2x1xf32>
    %23 = math.rsqrt %22 : vector<2x1xf32>
    %24 = arith.mulf %17, %23 : vector<2x1xf32>
    %25 = tpu.iota {dimensions = array<i32: 0>} : vector<2x1xi32>
    %cst_4 = arith.constant 0.000000e+00 : f32
    %26 = vector.broadcast %cst_4 : f32 to vector<2x1xf32>
    %cst_5 = arith.constant 0.000000e+00 : f32
    %27 = vector.broadcast %cst_5 : f32 to vector<2x1xf32>
    %c0_6 = arith.constant 0 : index
    %28 = memref.load %arg0[%c0_6] : memref<7xf32, #tpu.memory_space<smem>>
    %c2 = arith.constant 2 : index
    %29 = memref.load %arg0[%c2] : memref<7xf32, #tpu.memory_space<smem>>
    %c4 = arith.constant 4 : index
    %30 = memref.load %arg0[%c4] : memref<7xf32, #tpu.memory_space<smem>>
    %31 = arith.subf %29, %30 : f32
    %cst_7 = arith.constant 0.000000e+00 : f32
    %32 = arith.cmpf olt, %31, %cst_7 : f32
    %cst_8 = arith.constant 0.000000e+00 : f32
    %cst_9 = arith.constant 1.000000e+00 : f32
    %33 = arith.select %32, %cst_8, %cst_9 : f32
    %c0_i32 = arith.constant 0 : i32
    %34 = vector.broadcast %c0_i32 : i32 to vector<2x1xi32>
    %35 = arith.cmpi eq, %25, %34 : vector<2x1xi32>
    %36 = vector.broadcast %28 : f32 to vector<2x1xf32>
    %37 = arith.select %35, %36, %26 : vector<2x1xi1>, vector<2x1xf32>
    %c0_i32_10 = arith.constant 0 : i32
    %38 = vector.broadcast %c0_i32_10 : i32 to vector<2x1xi32>
    %39 = arith.cmpi eq, %25, %38 : vector<2x1xi32>
    %40 = vector.broadcast %33 : f32 to vector<2x1xf32>
    %41 = arith.select %39, %40, %27 : vector<2x1xi1>, vector<2x1xf32>
    %c1 = arith.constant 1 : index
    %42 = memref.load %arg0[%c1] : memref<7xf32, #tpu.memory_space<smem>>
    %c3 = arith.constant 3 : index
    %43 = memref.load %arg0[%c3] : memref<7xf32, #tpu.memory_space<smem>>
    %c5 = arith.constant 5 : index
    %44 = memref.load %arg0[%c5] : memref<7xf32, #tpu.memory_space<smem>>
    %45 = arith.subf %43, %44 : f32
    %cst_11 = arith.constant 0.000000e+00 : f32
    %46 = arith.cmpf olt, %45, %cst_11 : f32
    %cst_12 = arith.constant 0.000000e+00 : f32
    %cst_13 = arith.constant 1.000000e+00 : f32
    %47 = arith.select %46, %cst_12, %cst_13 : f32
    %c1_i32 = arith.constant 1 : i32
    %48 = vector.broadcast %c1_i32 : i32 to vector<2x1xi32>
    %49 = arith.cmpi eq, %25, %48 : vector<2x1xi32>
    %50 = vector.broadcast %42 : f32 to vector<2x1xf32>
    %51 = arith.select %49, %50, %37 : vector<2x1xi1>, vector<2x1xf32>
    %c1_i32_14 = arith.constant 1 : i32
    %52 = vector.broadcast %c1_i32_14 : i32 to vector<2x1xi32>
    %53 = arith.cmpi eq, %25, %52 : vector<2x1xi32>
    %54 = vector.broadcast %47 : f32 to vector<2x1xf32>
    %55 = arith.select %53, %54, %41 : vector<2x1xi1>, vector<2x1xf32>
    %c6 = arith.constant 6 : index
    %56 = memref.load %arg0[%c6] : memref<7xf32, #tpu.memory_space<smem>>
    %cst_15 = arith.constant 0.000000e+00 : f32
    %57 = vector.broadcast %cst_15 : f32 to vector<2x1xf32>
    %58 = arith.cmpf ogt, %51, %57 : vector<2x1xf32>
    %cst_16 = arith.constant 1.000000e+00 : f32
    %59 = vector.broadcast %cst_16 : f32 to vector<2x1xf32>
    %60 = arith.subf %59, %24 : vector<2x1xf32>
    %cst_17 = arith.constant 0.000000e+00 : f32
    %61 = vector.broadcast %cst_17 : f32 to vector<2x1xf32>
    %62 = arith.maximumf %24, %61 : vector<2x1xf32>
    %63 = arith.select %58, %60, %62 : vector<2x1xi1>, vector<2x1xf32>
    %64 = vector.shape_cast %63 : vector<2x1xf32> to vector<1x2x1xf32>
    %cst_18 = arith.constant dense<0.000000e+00> : vector<1xf32>
    %65 = vector.multi_reduction <add>, %64, %cst_18 [1, 2] : vector<1x2x1xf32> to vector<1xf32>
    %66 = vector.shape_cast %65 : vector<1xf32> to vector<1x1x1xf32>
    %67 = vector.extract %66[0, 0, 0] : f32 from vector<1x1x1xf32>
    %cst_19 = arith.constant 2.000000e+00 : f32
    %68 = arith.divf %67, %cst_19 : f32
    %69 = arith.subf %2, %3 : vector<2x128xf32>
    %70 = vector.extract_strided_slice %69 {offsets = [0, 0], sizes = [2, 32], strides = [1, 1]} : vector<2x128xf32> to vector<2x32xf32>
    %c0_20 = arith.constant 0 : index
    %c0_21 = arith.constant 0 : index
    %71 = vector.load %arg3[%c0_20, %c0_21] : memref<2x512xf32, #tpu.memory_space<vmem>>, vector<2x512xf32>
    %72 = vector.extract_strided_slice %71 {offsets = [0, 0], sizes = [1, 512], strides = [1, 1]} : vector<2x512xf32> to vector<1x512xf32>
    %73 = vector.extract_strided_slice %71 {offsets = [1, 0], sizes = [1, 512], strides = [1, 1]} : vector<2x512xf32> to vector<1x512xf32>
    %c0_22 = arith.constant 0 : index
    %c0_23 = arith.constant 0 : index
    %74 = vector.load %arg2[%c0_22, %c0_23] : memref<32x512xf32, #tpu.memory_space<vmem>>, vector<32x512xf32>
    %cst_24 = arith.constant dense<0.000000e+00> : vector<2x512xf32>
    %75 = tpu.matmul %70, %74, %cst_24 {dimension_numbers = #tpu.dot_dimension_numbers<[1], [0], [0], [1], [0, 0, 1, 1], [], []>} : vector<2x32xf32>, vector<32x512xf32>, vector<2x512xf32> -> vector<2x512xf32>
    %76 = vector.broadcast %72 : vector<1x512xf32> to vector<2x512xf32>
    %77 = arith.addf %75, %76 : vector<2x512xf32>
    %cst_25 = arith.constant 0.000000e+00 : f32
    %78 = vector.broadcast %cst_25 : f32 to vector<2x512xf32>
    %79 = arith.maximumf %77, %78 : vector<2x512xf32>
    %80 = vector.broadcast %73 : vector<1x512xf32> to vector<2x512xf32>
    %81 = arith.mulf %79, %80 : vector<2x512xf32>
    %cst_26 = arith.constant dense<0.000000e+00> : vector<2xf32>
    %82 = vector.multi_reduction <add>, %81, %cst_26 [1] : vector<2x512xf32> to vector<2xf32>
    %83 = vector.shape_cast %82 : vector<2xf32> to vector<2x1xf32>
    %84 = vector.broadcast %56 : f32 to vector<2x1xf32>
    %85 = arith.addf %83, %84 : vector<2x1xf32>
    %86 = arith.negf %85 : vector<2x1xf32>
    %87 = math.exp %86 : vector<2x1xf32>
    %cst_27 = arith.constant 1.000000e+00 : f32
    %88 = vector.broadcast %cst_27 : f32 to vector<2x1xf32>
    %89 = arith.addf %88, %87 : vector<2x1xf32>
    %90 = arith.divf %88, %89 : vector<2x1xf32>
    %cst_28 = arith.constant 0.000000e+00 : f32
    %91 = vector.broadcast %cst_28 : f32 to vector<2x1xf32>
    %92 = arith.maximumf %85, %91 : vector<2x1xf32>
    %93 = math.absf %85 : vector<2x1xf32>
    %cst_29 = arith.constant 0.000000e+00 : f32
    %94 = vector.broadcast %cst_29 : f32 to vector<2x1xf32>
    %95 = arith.subf %94, %93 : vector<2x1xf32>
    %96 = math.exp %95 : vector<2x1xf32>
    %97 = math.log1p %96 : vector<2x1xf32>
    %98 = arith.addf %92, %97 : vector<2x1xf32>
    %99 = arith.mulf %55, %85 : vector<2x1xf32>
    %100 = arith.subf %98, %99 : vector<2x1xf32>
    %101 = vector.shape_cast %100 : vector<2x1xf32> to vector<1x2x1xf32>
    %cst_30 = arith.constant dense<0.000000e+00> : vector<1xf32>
    %102 = vector.multi_reduction <add>, %101, %cst_30 [1, 2] : vector<1x2x1xf32> to vector<1xf32>
    %103 = vector.shape_cast %102 : vector<1xf32> to vector<1x1x1xf32>
    %104 = vector.extract %103[0, 0, 0] : f32 from vector<1x1x1xf32>
    %cst_31 = arith.constant 2.000000e+00 : f32
    %105 = arith.divf %104, %cst_31 : f32
    %106 = arith.addf %68, %105 : f32
    %cst_32 = arith.constant 0.000000e+00 : f32
    %107 = vector.broadcast %cst_32 : f32 to vector<6x1xf32>
    %108 = tpu.concatenate %90, %107 in 0 : vector<2x1xf32>, vector<6x1xf32> -> vector<8x1xf32>
    %109 = tpu.iota {dimensions = array<i32: 1>} : vector<8x128xi32>
    %c0_i32_33 = arith.constant 0 : i32
    %110 = vector.broadcast %c0_i32_33 : i32 to vector<8x128xi32>
    %111 = arith.cmpi eq, %109, %110 : vector<8x128xi32>
    %c1_i32_34 = arith.constant 1 : i32
    %112 = vector.broadcast %c1_i32_34 : i32 to vector<8x128xi32>
    %113 = arith.cmpi eq, %109, %112 : vector<8x128xi32>
    %cst_35 = arith.constant 0.000000e+00 : f32
    %114 = vector.broadcast %106 : f32 to vector<8x128xf32>
    %115 = vector.broadcast %cst_35 : f32 to vector<8x128xf32>
    %116 = arith.select %113, %114, %115 : vector<8x128xi1>, vector<8x128xf32>
    %117 = vector.shape_cast %108 : vector<8x1xf32> to vector<8x1xf32>
    %118 = vector.broadcast %117 : vector<8x1xf32> to vector<8x128xf32>
    %119 = arith.select %111, %118, %116 : vector<8x128xi1>, vector<8x128xf32>
    %c0_36 = arith.constant 0 : index
    %c0_37 = arith.constant 0 : index
    %120 = vector.load %arg4[%c0_36, %c0_37] : memref<8x128xf32, #tpu.memory_space<vmem>>, vector<8x128xf32>
    tpu.vector_store %arg4[%c0_36, %c0_37], %119 {strides = array<i32>} : memref<8x128xf32, #tpu.memory_space<vmem>>, vector<8x128xf32>,
    return
  }
}

</mosaic_0001>

<llo_original>
// kernel: transformer_predictor_forward.1
$region0: #{transformer_predictor_forward.1}
  #allocation0 [shape = 'u32[]', space=smem, size = 0x4, offset = 0x4, fixed_abs, tag = 'smem constant byte address 0x4 - core index']
  #allocation1 [shape = 'u32[144,128]{1,0:T(1,128)}', space=vmem, size = 0x12000, scoped, tag = 'internal scratch']
  %s0 = inlined_call_operand.vmem [shape: f32[7], index: 0, kind: input, shape index: {}]
  %s1 = inlined_call_operand.vmem [shape: f32[4,8,128], index: 1, kind: input, shape index: {}]
  %s2 = inlined_call_operand.hbm [shape: f32[32,512], index: 2, kind: input, shape index: {}]
  %s3 = inlined_call_operand.vmem [shape: f32[2,512], index: 3, kind: input, shape index: {}]
  %s4 = inlined_call_operand.vmem [shape: f32[8,128], index: 4, kind: output, shape index: {}]
  %s5 = sld [smem:[#allocation0]]
  $region34: #{transformer_predictor_forward.1} parent=0
    _
  %s7 = ssub.s32 1, %s5
  %s8 = scalar_select 0, %s7, %s5
  $region1: #{transformer_predictor_forward.1} parent=0
    #allocation2 [shape = 'u8[512]{0}', space=smem, size = 0x200, scoped, tag = 'input window, operand 0, single buffered']
    #allocation3 [shape = 's32[1]{0}', space=sflag, size = 0x4, scoped, tag = 'scoped memory for transformer_predictor_forward.1']
    #allocation4 [shape = 's32[1]{0}', space=sflag, size = 0x4, scoped, tag = 'scoped memory for transformer_predictor_forward.1']
    #allocation5 [shape = 'u8[65536]{0}', space=vmem, size = 0x10000, scoped, tag = 'input window, operand 2, single buffered']
    %9 = vsyncpa [#allocation4], 0
    %10 = vsyncpa [#allocation3], 0
    // Predicated region
    $region2: #{transformer_predictor_forward.1} parent=1 // pred_check
      _
    $region3: #{transformer_predictor_forward.1} parent=1 // pred_check_branch
      %12 = sbr.rel (0) target = $region5
    $region4: #{transformer_predictor_forward.1} parent=1 // pred_region
      %s14 = ssub.s32 16, 16
      %15 = vsyncadd [#allocation4], %s14
      %s17 = sshll.u32 %s0, 4
      %s18 = int_to_ptr.vmem [resolvable:$true] %s17
      %20 = dma.vmem_to_smem %s18, 16, [#allocation2], [#allocation4]
    $region5: #{transformer_predictor_forward.1} parent=1 // pred_fallthru
      _
    // Predicated region
    $region6: #{transformer_predictor_forward.1} parent=1 // pred_check
      _
    $region7: #{transformer_predictor_forward.1} parent=1 // pred_check_branch
      %22 = sbr.rel (0) target = $region9
    $region8: #{transformer_predictor_forward.1} parent=1 // pred_region
      _
    $region9: #{transformer_predictor_forward.1} parent=1 // pred_fallthru
      _
    // Predicated region
    $region10: #{transformer_predictor_forward.1} parent=1 // pred_check
      _
    $region11: #{transformer_predictor_forward.1} parent=1 // pred_check_branch
      %24 = sbr.rel (0) target = $region13
    $region12: #{transformer_predictor_forward.1} parent=1 // pred_region
      %s26 = ssub.s32 2048, 2048
      %27 = vsyncadd [#allocation3], %s26
      %s28 = sshll.u32 [#allocation5], 4
      %s29 = int_to_ptr.vmem [resolvable:$true] %s28
      %34 = dma.hbm_to_vmem [thread:$0]  %s2, 2048, %s29, [#allocation3], 512, 512, 32
    $region13: #{transformer_predictor_forward.1} parent=1 // pred_fallthru
      _
    // Predicated region
    $region14: #{transformer_predictor_forward.1} parent=1 // pred_check
      _
    $region15: #{transformer_predictor_forward.1} parent=1 // pred_check_branch
      %36 = sbr.rel (0) target = $region17
    $region16: #{transformer_predictor_forward.1} parent=1 // pred_region
      _
    $region17: #{transformer_predictor_forward.1} parent=1 // pred_fallthru
      _
    // Predicated region
    $region18: #{transformer_predictor_forward.1} parent=1 // pred_check
      _
    $region19: #{transformer_predictor_forward.1} parent=1 // pred_check_branch
      %38 = sbr.rel (0) target = $region21
    $region20: #{transformer_predictor_forward.1} parent=1 // pred_region
      %39 = dma.done [#allocation4], 16
    $region21: #{transformer_predictor_forward.1} parent=1 // pred_fallthru
      _
    // Predicated region
    $region22: #{transformer_predictor_forward.1} parent=1 // pred_check
      _
    $region23: #{transformer_predictor_forward.1} parent=1 // pred_check_branch
      %41 = sbr.rel (0) target = $region25
    $region24: #{transformer_predictor_forward.1} parent=1 // pred_region
      %42 = dma.done [#allocation3], 2048
    $region25: #{transformer_predictor_forward.1} parent=1 // pred_fallthru
      _
    %43 = sfence
    %v44 = vld [vmem:[%s1] sm:$0xff]
    %v45 = vld [vmem:[%s1 + $0x8] sm:$0xff]
    %v46 = vld [vmem:[%s1 + $0x10] sm:$0xff]
    %v47 = vld [vmem:[%s1 + $0x18] sm:$0xff]
    %v48 = vrot.slane %v44, 4
    %v49 = vadd.f32 %v44, %v48
    %v50 = vrot.slane %v49, 2
    %v51 = vadd.f32 %v49, %v50
    %v52 = vrot.slane %v51, 1
    %v53 = vadd.f32 %v51, %v52
    %v54 = vrot.slane %v45, 4
    %v55 = vadd.f32 %v45, %v54
    %v56 = vrot.slane %v55, 2
    %v57 = vadd.f32 %v55, %v56
    %v58 = vrot.slane %v57, 1
    %v59 = vadd.f32 %v57, %v58
    %v60 = vrot.slane %v46, 4
    %v61 = vadd.f32 %v46, %v60
    %v62 = vrot.slane %v61, 2
    %v63 = vadd.f32 %v61, %v62
    %v64 = vrot.slane %v63, 1
    %v65 = vadd.f32 %v63, %v64
    %v66 = vrot.slane %v47, 4
    %v67 = vadd.f32 %v47, %v66
    %v68 = vrot.slane %v67, 2
    %v69 = vadd.f32 %v67, %v68
    %v70 = vrot.slane %v69, 1
    %v71 = vadd.f32 %v69, %v70
    %v72 = vlaneseq
    %v73 = vand.u32 %v72, 127
    %vm74 = vcmp.ge.s32.totalorder %v73, 28
    %v75 = vsel %vm74, 1, 0
    %v76 = vcvt.s32.f32 %v75
    %v77 = vmul.f32 %v53, %v76
    %v78 = vmul.f32 %v59, %v76
    %v79 = vmul.f32 %v65, %v76
    %v80 = vmul.f32 %v71, %v76
    %v81 = vmul.f32 %v77, %v79
    %v82 = vmul.f32 %v78, %v80
    %v83 = vmul.f32 %v77, %v77
    %v84 = vmul.f32 %v78, %v78
    %v85 = vmul.f32 %v79, %v79
    %v86 = vmul.f32 %v80, %v80
    %v89 = vrot.slane %v82, 7
    %vm90 = vcmask 1041409
    %v91 = vsel %vm90, %v89, %v81
    %v95 = vrot.slane %v83, 6
    %v96 = vrot.slane %v84, 5
    %vm97 = vcmask 1043459
    %v98 = vsel %vm97, %v96, %v95
    %v102 = vrot.slane %v85, 4
    %v103 = vrot.slane %v86, 3
    %vm104 = vcmask 1045509
    %v105 = vsel %vm104, %v103, %v102
    %vm107 = vcmask 1041408
    %v108 = vsel %vm107, %v91, %v98
    %vm109 = vcmask 1043456
    %v110 = vsel %vm109, %v108, %v105
    %vm111 = vcmask 1045504
    %v112 = vsel %vm111, %v110, 0.0
    %113 = vadd.xlane.f32.xlu0 %v112
    %v114 = vpop.xlane.xlu0 %113
    %v116 = vrot.slane %v114, 2
    %v118 = vmul.f32 %v114, %v116
    %v119 = vmax.f32 %v118, 1e-16
    %v120 = vrsqrt.pop %v119
    %v122 = vrot.slane %v120, 2
    %v124 = vmul.f32 %v114, %v122
    %v125 = vlaneseq
    %v126 = vshrl.u32 %v125, 7
    %s127 = sld [smem:[#allocation2]]
    %s128 = sld [smem:[#allocation2 + $0x2]]
    %s129 = sld [smem:[#allocation2 + $0x4]]
    %s130 = ssub.f32 %s128, %s129
    %p131 = scmp.lt.f32.partialorder %s130, 0.0
    %s132 = scalar_select %p131, 0.0, 1.0
    %vm133 = vcmp.eq.s32.totalorder %v126, 0
    %v134 = vstv %s127
    %v135 = vsel %vm133, %v134, 0.0
    %v136 = vstv %s132
    %v137 = vsel %vm133, %v136, 0.0
    %s138 = sld [smem:[#allocation2 + $0x1]]
    %s139 = sld [smem:[#allocation2 + $0x3]]
    %s140 = sld [smem:[#allocation2 + $0x5]]
    %s141 = ssub.f32 %s139, %s140
    %p142 = scmp.lt.f32.partialorder %s141, 0.0
    %s143 = scalar_select %p142, 0.0, 1.0
    %vm144 = vcmp.eq.s32.totalorder %v126, 1
    %v145 = vstv %s138
    %v146 = vsel %vm144, %v145, %v135
    %v147 = vstv %s143
    %v148 = vsel %vm144, %v147, %v137
    %s149 = sld [smem:[#allocation2 + $0x6]]
    %vm150 = vcmp.gt.f32.partialorder %v146, 0.0
    %v151 = vsub.f32 1.0, %v124
    %v152 = vmax.f32 %v124, 0.0
    %v153 = vsel %vm150, %v151, %v152
    %vm154 = vcmask 1024
    %v155 = vsel %vm154, %v153, 0.0
    %156 = vadd.xlane.f32.xlu0 %v155
    %v157 = vpop.xlane.xlu0 %156
    %v158 = vrot.slane %v157, 4
    %v159 = vadd.f32 %v157, %v158
    %v160 = vrot.slane %v159, 2
    %v161 = vadd.f32 %v159, %v160
    %v162 = vrot.slane %v161, 1
    %v163 = vadd.f32 %v161, %v162
    %s164 = vtos %v163
    %v165 = vrcp.pop 2.0
    %s166 = vtos %v165
    %s167 = smul.f32 %s164, %s166
    %v168 = vsub.f32 %v53, %v65
    %v169 = vsub.f32 %v59, %v71
    %v170 = vld [vmem:[%s3] sm:$0xff]
    %v171 = vld [vmem:[#allocation5] sm:$0xff]
    %v172 = vld [vmem:[#allocation5 + $0x8] sm:$0xff]
    %v173 = vld [vmem:[#allocation5 + $0x10] sm:$0xff]
    %v174 = vld [vmem:[#allocation5 + $0x18] sm:$0xff]
    %v175 = vld [vmem:[#allocation5 + $0x20] sm:$0xff]
    %v176 = vld [vmem:[#allocation5 + $0x28] sm:$0xff]
    %v177 = vld [vmem:[#allocation5 + $0x30] sm:$0xff]
    %v178 = vld [vmem:[#allocation5 + $0x38] sm:$0xff]
    %v179 = vld [vmem:[#allocation5 + $0x40] sm:$0xff]
    %v180 = vld [vmem:[#allocation5 + $0x48] sm:$0xff]
    %v181 = vld [vmem:[#allocation5 + $0x50] sm:$0xff]
    %v182 = vld [vmem:[#allocation5 + $0x58] sm:$0xff]
    %v183 = vld [vmem:[#allocation5 + $0x60] sm:$0xff]
    %v184 = vld [vmem:[#allocation5 + $0x68] sm:$0xff]
    %v185 = vld [vmem:[#allocation5 + $0x70] sm:$0xff]
    %v186 = vld [vmem:[#allocation5 + $0x78] sm:$0xff]
    %v188 = vlaneseq
    %v189 = vshrl.u32 %v188, 7
    %v190 = vsub.s32 0, %v189
    %v191 = vrot.slane %v170, %v190
    %v192 = vlaneseq
    %v193 = vshrl.u32 %v192, 7
    %v194 = vsub.s32 2, %v193
    %v195 = vrot.slane %v170, %v194
    %v196 = vlaneseq
    %v197 = vshrl.u32 %v196, 7
    %v198 = vsub.s32 4, %v197
    %v199 = vrot.slane %v170, %v198
    %v200 = vlaneseq
    %v201 = vshrl.u32 %v200, 7
    %v202 = vsub.s32 6, %v201
    %v203 = vrot.slane %v170, %v202
    %v208 = vlaneseq
    %v209 = vshrl.u32 %v208, 7
    %v210 = vsub.s32 0, %v209
    %v211 = vrot.slane %v191, %v210
    %v212 = vlaneseq
    %v213 = vshrl.u32 %v212, 7
    %v214 = vsub.s32 0, %v213
    %v215 = vrot.slane %v195, %v214
    %v216 = vlaneseq
    %v217 = vshrl.u32 %v216, 7
    %v218 = vsub.s32 0, %v217
    %v219 = vrot.slane %v199, %v218
    %v220 = vlaneseq
    %v221 = vshrl.u32 %v220, 7
    %v222 = vsub.s32 0, %v221
    %v223 = vrot.slane %v203, %v222
    %v226 = vsel %vm90, %v169, %v168
    %vm227 = vcmask 261120
    %v228 = vsel %vm227, %v226, 0
    %230 = vmatprep.subr.mxu0 0.0
    %231 = vmatpush1.msra.mxu0 0.0
    %232 = vmatprep.subr.mxu0 0.0
    %233 = vmatpush1.msra.mxu0 0.0
    %234 = vmatprep.subr.mxu0 0.0
    %235 = vmatpush1.msra.mxu0 0.0
    %236 = vmatprep.subr.mxu0 0.0
    %237 = vmatpush1.msra.mxu0 0.0
    %238 = vmatprep.subr.mxu0 0.0
    %239 = vmatpush1.msra.mxu0 0.0
    %240 = vmatprep.subr.mxu0 0.0
    %241 = vmatpush1.msra.mxu0 0.0
    %242 = vmatprep.subr.mxu0 0.0
    %243 = vmatpush1.msra.mxu0 0.0
    %244 = vmatprep.subr.mxu0 0.0
    %245 = vmatpush1.msra.mxu0 0.0
    %246 = vmatprep.subr.mxu0 0.0
    %247 = vmatpush1.msra.mxu0 0.0
    %248 = vmatprep.subr.mxu0 0.0
    %249 = vmatpush1.msra.mxu0 0.0
    %250 = vmatprep.subr.mxu0 0.0
    %251 = vmatpush1.msra.mxu0 0.0
    %252 = vmatprep.subr.mxu0 0.0
    %253 = vmatpush1.msra.mxu0 0.0
    %254 = vmatprep.subr.mxu0 %v184
    %255 = vmatpush1.msra.mxu0 %v183
    %256 = vmatprep.subr.mxu0 %v180
    %257 = vmatpush1.msra.mxu0 %v179
    %258 = vmatprep.subr.mxu0 %v176
    %259 = vmatpush1.msra.mxu0 %v175
    %260 = vmatprep.subr.mxu0 %v172
    %261 = vmatpush1.msra.mxu0 %v171
    %262 = vmatprep.subr.mxu0 0.0
    %263 = vmatpush2.msra.mxu0 0.0
    %264 = vmatprep.subr.mxu0 0.0
    %265 = vmatpush2.msra.mxu0 0.0
    %266 = vmatprep.subr.mxu0 0.0
    %267 = vmatpush2.msra.mxu0 0.0
    %268 = vmatprep.subr.mxu0 0.0
    %269 = vmatpush2.msra.mxu0 0.0
    %270 = vmatprep.subr.mxu0 0.0
    %271 = vmatpush2.msra.mxu0 0.0
    %272 = vmatprep.subr.mxu0 0.0
    %273 = vmatpush2.msra.mxu0 0.0
    %274 = vmatprep.subr.mxu0 0.0
    %275 = vmatpush2.msra.mxu0 0.0
    %276 = vmatprep.subr.mxu0 0.0
    %277 = vmatpush2.msra.mxu0 0.0
    %278 = vmatprep.subr.mxu0 0.0
    %279 = vmatpush2.msra.mxu0 0.0
    %280 = vmatprep.subr.mxu0 0.0
    %281 = vmatpush2.msra.mxu0 0.0
    %282 = vmatprep.subr.mxu0 0.0
    %283 = vmatpush2.msra.mxu0 0.0
    %284 = vmatprep.subr.mxu0 0.0
    %285 = vmatpush2.msra.mxu0 0.0
    %286 = vmatprep.subr.mxu0 0.0
    %287 = vmatpush2.msra.mxu0 0.0
    %288 = vmatprep.subr.mxu0 0.0
    %289 = vmatpush2.msra.mxu0 0.0
    %290 = vmatprep.subr.mxu0 0.0
    %291 = vmatpush2.msra.mxu0 0.0
    %292 = vmatprep.subr.mxu0 0.0
    %293 = vmatpush2.msra.mxu0 0.0
    %294 = vmatprep.mubr.f32.mxu0 0.0
    %295 = vmatmul.mubr.f32.gmra.mxu0 %v228
    %v296 = vpop.f32.mrf.mxu0
    %v297 = vadd.f32 %v211, %v296
    %v298 = vpop.f32.mrf.mxu0
    %v299 = vadd.f32 %v215, %v298
    %300 = vdwg.mxu0
    %301 = vmatprep.subr.mxu0 0.0
    %302 = vmatpush1.msra.mxu0 0.0
    %303 = vmatprep.subr.mxu0 0.0
    %304 = vmatpush1.msra.mxu0 0.0
    %305 = vmatprep.subr.mxu0 0.0
    %306 = vmatpush1.msra.mxu0 0.0
    %307 = vmatprep.subr.mxu0 0.0
    %308 = vmatpush1.msra.mxu0 0.0
    %309 = vmatprep.subr.mxu0 0.0
    %310 = vmatpush1.msra.mxu0 0.0
    %311 = vmatprep.subr.mxu0 0.0
    %312 = vmatpush1.msra.mxu0 0.0
    %313 = vmatprep.subr.mxu0 0.0
    %314 = vmatpush1.msra.mxu0 0.0
    %315 = vmatprep.subr.mxu0 0.0
    %316 = vmatpush1.msra.mxu0 0.0
    %317 = vmatprep.subr.mxu0 0.0
    %318 = vmatpush1.msra.mxu0 0.0
    %319 = vmatprep.subr.mxu0 0.0
    %320 = vmatpush1.msra.mxu0 0.0
    %321 = vmatprep.subr.mxu0 0.0
    %322 = vmatpush1.msra.mxu0 0.0
    %323 = vmatprep.subr.mxu0 0.0
    %324 = vmatpush1.msra.mxu0 0.0
    %325 = vmatprep.subr.mxu0 %v186
    %326 = vmatpush1.msra.mxu0 %v185
    %327 = vmatprep.subr.mxu0 %v182
    %328 = vmatpush1.msra.mxu0 %v181
    %329 = vmatprep.subr.mxu0 %v178
    %330 = vmatpush1.msra.mxu0 %v177
    %331 = vmatprep.subr.mxu0 %v174
    %332 = vmatpush1.msra.mxu0 %v173
    %333 = vmatprep.subr.mxu0 0.0
    %334 = vmatpush2.msra.mxu0 0.0
    %335 = vmatprep.subr.mxu0 0.0
    %336 = vmatpush2.msra.mxu0 0.0
    %337 = vmatprep.subr.mxu0 0.0
    %338 = vmatpush2.msra.mxu0 0.0
    %339 = vmatprep.subr.mxu0 0.0
    %340 = vmatpush2.msra.mxu0 0.0
    %341 = vmatprep.subr.mxu0 0.0
    %342 = vmatpush2.msra.mxu0 0.0
    %343 = vmatprep.subr.mxu0 0.0
    %344 = vmatpush2.msra.mxu0 0.0
    %345 = vmatprep.subr.mxu0 0.0
    %346 = vmatpush2.msra.mxu0 0.0
    %347 = vmatprep.subr.mxu0 0.0
    %348 = vmatpush2.msra.mxu0 0.0
    %349 = vmatprep.subr.mxu0 0.0
    %350 = vmatpush2.msra.mxu0 0.0
    %351 = vmatprep.subr.mxu0 0.0
    %352 = vmatpush2.msra.mxu0 0.0
    %353 = vmatprep.subr.mxu0 0.0
    %354 = vmatpush2.msra.mxu0 0.0
    %355 = vmatprep.subr.mxu0 0.0
    %356 = vmatpush2.msra.mxu0 0.0
    %357 = vmatprep.subr.mxu0 0.0
    %358 = vmatpush2.msra.mxu0 0.0
    %359 = vmatprep.subr.mxu0 0.0
    %360 = vmatpush2.msra.mxu0 0.0
    %361 = vmatprep.subr.mxu0 0.0
    %362 = vmatpush2.msra.mxu0 0.0
    %363 = vmatprep.subr.mxu0 0.0
    %364 = vmatpush2.msra.mxu0 0.0
    %365 = vmatprep.mubr.f32.mxu0 0.0
    %366 = vmatmul.mubr.f32.gmra.mxu0 %v228
    %v367 = vpop.f32.mrf.mxu0
    %v368 = vadd.f32 %v219, %v367
    %v369 = vpop.f32.mrf.mxu0
    %v370 = vadd.f32 %v223, %v369
    %371 = vdwg.mxu0
    %v372 = vmax.f32 %v297, 0.0
    %v373 = vmax.f32 %v299, 0.0
    %v374 = vmax.f32 %v368, 0.0
    %v375 = vmax.f32 %v370, 0.0
    %v376 = vlaneseq
    %v377 = vshrl.u32 %v376, 7
    %v378 = vsub.s32 1, %v377
    %v379 = vrot.slane %v170, %v378
    %v380 = vlaneseq
    %v381 = vshrl.u32 %v380, 7
    %v382 = vsub.s32 3, %v381
    %v383 = vrot.slane %v170, %v382
    %v384 = vlaneseq
    %v385 = vshrl.u32 %v384, 7
    %v386 = vsub.s32 5, %v385
    %v387 = vrot.slane %v170, %v386
    %v388 = vlaneseq
    %v389 = vshrl.u32 %v388, 7
    %v390 = vsub.s32 7, %v389
    %v391 = vrot.slane %v170, %v390
    %v396 = vlaneseq
    %v397 = vshrl.u32 %v396, 7
    %v398 = vsub.s32 1, %v397
    %v399 = vrot.slane %v379, %v398
    %v400 = vlaneseq
    %v401 = vshrl.u32 %v400, 7
    %v402 = vsub.s32 1, %v401
    %v403 = vrot.slane %v383, %v402
    %v404 = vlaneseq
    %v405 = vshrl.u32 %v404, 7
    %v406 = vsub.s32 1, %v405
    %v407 = vrot.slane %v387, %v406
    %v408 = vlaneseq
    %v409 = vshrl.u32 %v408, 7
    %v410 = vsub.s32 1, %v409
    %v411 = vrot.slane %v391, %v410
    %v412 = vmul.f32 %v372, %v399
    %v413 = vmul.f32 %v373, %v403
    %v414 = vmul.f32 %v374, %v407
    %v415 = vmul.f32 %v375, %v411
    %v416 = vsel %vm107, %v412, 0.0
    %v417 = vsel %vm107, %v413, 0.0
    %v418 = vadd.f32 %v416, %v417
    %v419 = vsel %vm107, %v414, 0.0
    %v420 = vadd.f32 %v418, %v419
    %v421 = vsel %vm107, %v415, 0.0
    %v422 = vadd.f32 %v420, %v421
    %423 = vadd.xlane.f32.xlu0 %v422
    %v424 = vpop.xlane.xlu0 %423
    %v425 = vstv %s149
    %v426 = vadd.f32 %v424, %v425
    %v427 = vxor.u32 %v426, 2147483648
    %v428 = vmul.f32 %v427, 1.442695
    %v429 = vpow.pop %v428
    %v430 = vadd.f32 %v429, 1.0
    %v431 = vrcp.pop %v430
    %v432 = vmul.f32 1.0, %v431
    %v433 = vmax.f32 %v426, 0.0
    %v434 = vand.u32 2147483647, %v426
    %v435 = vsub.f32 0.0, %v434
    %v436 = vmul.f32 %v435, 1.442695
    %v437 = vpow.pop %v436
    %v438 = vadd.f32 %v437, 1.0
    %v439 = vlog2.pop %v438
    %v440 = vmul.f32 %v439, 0.6931472
    %v441 = vmul.f32 -0.5, %v437
    %v442 = vadd.f32 %v441, 1.0
    %v443 = vmul.f32 %v442, %v437
    %v444 = vand.u32 2147483647, %v437
    %vm445 = vcmp.lt.f32.partialorder %v444, 0.0004427343
    %v446 = vsel %vm445, %v443, %v440
    %v447 = vadd.f32 %v433, %v446
    %v448 = vmul.f32 %v148, %v426
    %v449 = vsub.f32 %v447, %v448
    %v450 = vsel %vm154, %v449, 0.0
    %451 = vadd.xlane.f32.xlu0 %v450
    %v452 = vpop.xlane.xlu0 %451
    %v453 = vrot.slane %v452, 4
    %v454 = vadd.f32 %v452, %v453
    %v455 = vrot.slane %v454, 2
    %v456 = vadd.f32 %v454, %v455
    %v457 = vrot.slane %v456, 1
    %v458 = vadd.f32 %v456, %v457
    %s459 = vtos %v458
    %v460 = vrcp.pop 2.0
    %s461 = vtos %v460
    %s462 = smul.f32 %s459, %s461
    %s463 = sadd.f32 %s167, %s462
    %v464 = vsel %vm107, %v432, 0.0
    %vm465 = vcmp.eq.s32.totalorder %v73, 0
    %vm466 = vcmp.eq.s32.totalorder %v73, 1
    %v467 = vstv %s463
    %v468 = vsel %vm466, %v467, 0.0
    %470 = vset.pattern.permute.xlu0 0
    %471 = vperm.xlu0 %470, %v464
    %v472 = vpop.permute.xlu0 %471
    %v474 = vsel %vm465, %v472, %v468
    %475 = vst [vmem:[%s4] sm:$0xff] %v474
    // Predicated region
    $region26: #{transformer_predictor_forward.1} parent=1 // pred_check
      _
    $region27: #{transformer_predictor_forward.1} parent=1 // pred_check_branch
      %477 = sbr.rel (0) target = $region29
    $region28: #{transformer_predictor_forward.1} parent=1 // pred_region
      _
    $region29: #{transformer_predictor_forward.1} parent=1 // pred_fallthru
      _
    // Predicated region
    $region30: #{transformer_predictor_forward.1} parent=1 // pred_check
      _
    $region31: #{transformer_predictor_forward.1} parent=1 // pred_check_branch
      %479 = sbr.rel (0) target = $region33
    $region32: #{transformer_predictor_forward.1} parent=1 // pred_region
      _
    $region33: #{transformer_predictor_forward.1} parent=1 // pred_fallthru
      _
    %480 = vsyncpa [#allocation3], 1
    %481 = vsyncpa [#allocation4], 1

</llo_original>
